<compile_context>
chip_gen: v5e
topology: v5e:2x2
jax: 0.10.0
libtpu: 0.0.40
codegen_flags: <defaults>
</compile_context>

<pallas_src>
import jax
import jax.numpy as jnp
from jax.experimental import pallas as pl
from jax.experimental.pallas import tpu as pltpu


def _round_up(x, m):
    return (x + m - 1) // m * m


# -----------------------------------------------------------------------------
# Kernel
# -----------------------------------------------------------------------------
def controller_seq_kernel(
    x_ref,      # (1, B, IN_P)   bf16   current timestep input (zero-padded)
    h0_ref,     # (2, B, H)      f32    initial hidden state (both layers)
    c0_ref,     # (2, B, H)      f32    initial cell state   (both layers)
    w0_ref,     # (IN_P + H, 4H) bf16   fused [W_ih0 ; W_hh0]
    b0_ref,     # (1, 4H)        f32    b_ih0 + b_hh0
    w1_ref,     # (2H, 4H)       bf16   fused [W_ih1 ; W_hh1]
    b1_ref,     # (1, 4H)        f32    b_ih1 + b_hh1
    wout_ref,   # (H, O_P)       bf16   output projection (lane-padded)
    bout_ref,   # (1, O_P)       f32
    out_ref,    # (1, B, O_P)    f32    per-step output (lane-dense)
    hout_ref,   # (2, B, H)      f32    resident running hidden state
    cout_ref,   # (2, B, H)      f32    resident running cell state
):
    t = pl.program_id(0)
    H = hout_ref.shape[2]

    # Initialize the resident state blocks from the provided initial state.
    @pl.when(t == 0)
    def _init():
        hout_ref[...] = h0_ref[...]
        cout_ref[...] = c0_ref[...]

    def gate_act(gates):
        # One EUP pass over the full (B, 4H) lane-dense tile:
        #   lanes [2H, 3H) (the "g" gate) -> tanh(x)
        #   all other lanes (i, f, o)     -> sigmoid(x) = 0.5*tanh(0.5*x)+0.5
        lane = jax.lax.broadcasted_iota(jnp.int32, gates.shape, 1)
        is_g = jnp.logical_and(lane >= 2 * H, lane < 3 * H)
        pre = jnp.where(is_g, gates, 0.5 * gates)
        th = jnp.tanh(pre)
        return jnp.where(is_g, th, 0.5 * th + 0.5)

    def lstm_cell(xin, h_prev, c_prev, w_ref, b_ref):
        # Fused input/recurrent matmul: [x | h_prev] @ [W_ih ; W_hh]
        xh = jnp.concatenate(
            [xin.astype(jnp.float32), h_prev], axis=-1
        ).astype(jnp.bfloat16)
        gates = (
            jnp.dot(xh, w_ref[...], preferred_element_type=jnp.float32)
            + b_ref[...]
        )
        act = gate_act(gates)
        i = act[:, 0 * H:1 * H]
        f = act[:, 1 * H:2 * H]
        g = act[:, 2 * H:3 * H]
        o = act[:, 3 * H:4 * H]
        c_new = f * c_prev + i * g
        h_new = o * jnp.tanh(c_new)
        return h_new, c_new

    x = x_ref[0]                               # (B, IN_P) bf16

    # ----- layer 0 -----
    h_new0, c_new0 = lstm_cell(x, hout_ref[0], cout_ref[0], w0_ref, b0_ref)
    # ----- layer 1 (input = layer-0 output) -----
    h_new1, c_new1 = lstm_cell(h_new0, hout_ref[1], cout_ref[1], w1_ref, b1_ref)

    hout_ref[0] = h_new0
    hout_ref[1] = h_new1
    cout_ref[0] = c_new0
    cout_ref[1] = c_new1

    # ----- map_to_output on the last layer's h (lane-dense, O padded to 128) --
    out_ref[0] = (
        jnp.dot(h_new1.astype(jnp.bfloat16), wout_ref[...],
                preferred_element_type=jnp.float32)
        + bout_ref[...]
    )


# -----------------------------------------------------------------------------
# Wrappers
# -----------------------------------------------------------------------------
def controller_rollout(x_seq, prev_state, kp):
    """Run T controller steps in one fused kernel.

    x_seq: (T, B, insize) f32; prev_state: (h (2,B,H), c (2,B,H)).
    Returns (outputs (T, B, O), (h_n (2,B,H), c_n (2,B,H))).
    """
    h0, c0 = prev_state
    T, B, insize = x_seq.shape
    H = h0.shape[-1]
    in_p = kp["w0"].shape[0] - H
    o_p = kp["w_out"].shape[-1]
    O = kp["out_size"]

    # Zero-pad the input features once for the whole sequence (bf16 halves DMA).
    x_pad = jnp.pad(x_seq.astype(jnp.bfloat16),
                    ((0, 0), (0, 0), (0, in_p - insize)))

    grid_spec = pltpu.PrefetchScalarGridSpec(
        num_scalar_prefetch=0,
        grid=(T,),
        in_specs=[
            pl.BlockSpec((1, B, in_p), lambda t: (t, 0, 0)),     # x_t
            pl.BlockSpec((2, B, H), lambda t: (0, 0, 0)),        # h0 (loaded once)
            pl.BlockSpec((2, B, H), lambda t: (0, 0, 0)),        # c0 (loaded once)
            pl.BlockSpec(kp["w0"].shape, lambda t: (0, 0)),      # weights: resident
            pl.BlockSpec(kp["b0"].shape, lambda t: (0, 0)),
            pl.BlockSpec(kp["w1"].shape, lambda t: (0, 0)),
            pl.BlockSpec(kp["b1"].shape, lambda t: (0, 0)),
            pl.BlockSpec(kp["w_out"].shape, lambda t: (0, 0)),
            pl.BlockSpec(kp["b_out"].shape, lambda t: (0, 0)),
        ],
        out_specs=[
            pl.BlockSpec((1, B, o_p), lambda t: (t, 0, 0)),      # per-step output
            pl.BlockSpec((2, B, H), lambda t: (0, 0, 0)),        # resident h state
            pl.BlockSpec((2, B, H), lambda t: (0, 0, 0)),        # resident c state
        ],
    )

    out_seq_p, h_n, c_n = pl.pallas_call(
        controller_seq_kernel,
        out_shape=(
            jax.ShapeDtypeStruct((T, B, o_p), jnp.float32),
            jax.ShapeDtypeStruct((2, B, H), jnp.float32),
            jax.ShapeDtypeStruct((2, B, H), jnp.float32),
        ),
        grid_spec=grid_spec,
        compiler_params=pltpu.CompilerParams(
            dimension_semantics=("arbitrary",)),   # time loop is serial
    )(x_pad, h0, c0, kp["w0"], kp["b0"], kp["w1"], kp["b1"],
      kp["w_out"], kp["b_out"])

    return out_seq_p[:, :, :O], (h_n, c_n)


def controller_forward(inputs, prev_state, kp):
    """Module-exact single step: inputs (B, insize) -> (outputs (B, O), state)."""
    out_seq, state = controller_rollout(inputs[None], prev_state, kp)
    return out_seq[0], state


# -----------------------------------------------------------------------------
# Parameters (PyTorch layout) and kernel-layout conversion
# -----------------------------------------------------------------------------
def init_params(key, insize, hidden_size, output_size):
    """Deterministic synthetic parameters with nn.LSTM / nn.Linear layouts."""
    ks = jax.random.split(key, 10)
    H, O = hidden_size, output_size
    scale = 1.0 / jnp.sqrt(jnp.float32(H))

    def u(k, shape):
        return jax.random.uniform(k, shape, jnp.float32, -scale, scale)

    return {
        "w_ih0": u(ks[0], (4 * H, insize)), "w_hh0": u(ks[1], (4 * H, H)),
        "b_ih0": u(ks[2], (4 * H,)),        "b_hh0": u(ks[3], (4 * H,)),
        "w_ih1": u(ks[4], (4 * H, H)),      "w_hh1": u(ks[5], (4 * H, H)),
        "b_ih1": u(ks[6], (4 * H,)),        "b_hh1": u(ks[7], (4 * H,)),
        "w_out": u(ks[8], (O, H)),          "b_out": u(ks[9], (O,)),
    }


def prepare_kernel_params(tp, insize, H, O):
    """Fuse [W_ih; W_hh] per layer, pre-transpose, pad, and cast to bf16."""
    in_p = _round_up(insize, 32)     # pad contraction to a clean multiple
    o_p = _round_up(O, 128)          # lane-dense output width

    w_ih0_p = jnp.zeros((in_p, 4 * H), jnp.float32).at[:insize, :].set(tp["w_ih0"].T)
    w0 = jnp.concatenate([w_ih0_p, tp["w_hh0"].T], axis=0).astype(jnp.bfloat16)
    b0 = (tp["b_ih0"] + tp["b_hh0"]).reshape(1, 4 * H)

    w1 = jnp.concatenate([tp["w_ih1"].T, tp["w_hh1"].T], axis=0).astype(jnp.bfloat16)
    b1 = (tp["b_ih1"] + tp["b_hh1"]).reshape(1, 4 * H)

    w_out = (jnp.zeros((H, o_p), jnp.float32).at[:, :O].set(tp["w_out"].T)
             .astype(jnp.bfloat16))
    b_out = jnp.zeros((1, o_p), jnp.float32).at[0, :O].set(tp["b_out"])

    return {"w0": w0, "b0": b0, "w1": w1, "b1": b1,
            "w_out": w_out, "b_out": b_out, "out_size": O}


# -----------------------------------------------------------------------------
# Pure-JAX reference (same math; bf16 matmul operands to mirror MXU precision)
# -----------------------------------------------------------------------------
def reference_rollout(x_seq, prev_state, tp):
    h, c = prev_state
    h_l0, h_l1 = h[0], h[1]
    c_l0, c_l1 = c[0], c[1]

    def dot_bf16(a, b):
        return jnp.dot(a.astype(jnp.bfloat16), b.astype(jnp.bfloat16),
                       preferred_element_type=jnp.float32)

    def cell(x, h_, c_, w_ih, w_hh, b_ih, b_hh):
        g = dot_bf16(x, w_ih.T) + dot_bf16(h_, w_hh.T) + b_ih + b_hh
        H = h_.shape[-1]
        i = jax.nn.sigmoid(g[:, :H])
        f = jax.nn.sigmoid(g[:, H:2 * H])
        gg = jnp.tanh(g[:, 2 * H:3 * H])
        o = jax.nn.sigmoid(g[:, 3 * H:])
        c_new = f * c_ + i * gg
        return o * jnp.tanh(c_new), c_new

    outs = []
    for t in range(x_seq.shape[0]):
        h_l0, c_l0 = cell(x_seq[t], h_l0, c_l0,
                          tp["w_ih0"], tp["w_hh0"], tp["b_ih0"], tp["b_hh0"])
        h_l1, c_l1 = cell(h_l0, h_l1, c_l1,
                          tp["w_ih1"], tp["w_hh1"], tp["b_ih1"], tp["b_hh1"])
        outs.append(dot_bf16(h_l1, tp["w_out"].T) + tp["b_out"])
    return jnp.stack(outs), (jnp.stack([h_l0, h_l1]), jnp.stack([c_l0, c_l1]))


# -----------------------------------------------------------------------------
if __name__ == "__main__":
    # insize = word_size + word_size*num_reads = 4 + 4*2 = 12; output_size = 24;
    # num_layers = 2; hidden shrunk to 32 for a small demo; T = 16 rollout steps.
    T, B, insize, H, O, L = 16, 8, 12, 32, 24, 2

    key = jax.random.PRNGKey(0)
    k_par, k_x, k_h, k_c = jax.random.split(key, 4)

    torch_params = init_params(k_par, insize, H, O)
    kparams = prepare_kernel_params(torch_params, insize, H, O)

    x_seq = jax.random.normal(k_x, (T, B, insize), jnp.float32)
    h_prev = jax.random.normal(k_h, (L, B, H), jnp.float32)
    c_prev = jax.random.normal(k_c, (L, B, H), jnp.float32)

    # Fused T-step rollout (one pallas_call).
    out_seq, (h_n, c_n) = controller_rollout(x_seq, (h_prev, c_prev), kparams)
    jax.block_until_ready((out_seq, h_n, c_n))

    ref_out, (ref_h, ref_c) = reference_rollout(x_seq, (h_prev, c_prev), torch_params)
    assert jnp.allclose(out_seq, ref_out, atol=2e-3), "rollout output mismatch"
    assert jnp.allclose(h_n, ref_h, atol=2e-3), "rollout h_n mismatch"
    assert jnp.allclose(c_n, ref_c, atol=2e-3), "rollout c_n mismatch"

    # Module-exact single step (PyTorch forward semantics): T = 1.
    out1, (h1, c1) = controller_forward(x_seq[0], (h_prev, c_prev), kparams)
    jax.block_until_ready((out1, h1, c1))
    ref1_out, (ref1_h, ref1_c) = reference_rollout(
        x_seq[:1], (h_prev, c_prev), torch_params)
    assert jnp.allclose(out1, ref1_out[0], atol=2e-3), "single-step output mismatch"
    assert jnp.allclose(h1, ref1_h, atol=2e-3), "single-step h mismatch"
    assert jnp.allclose(c1, ref1_c, atol=2e-3), "single-step c mismatch"

    print("KERNEL_OK")
</pallas_src>

<mosaic_0001>
module attributes {stable_mosaic.version = 11 : i64} {
  func.func @controller_seq_kernel(%arg0: i32, %arg1: memref<1x8x32xbf16, #tpu.memory_space<vmem>>, %arg2: memref<2x8x32xf32, #tpu.memory_space<vmem>>, %arg3: memref<2x8x32xf32, #tpu.memory_space<vmem>>, %arg4: memref<64x128xbf16, #tpu.memory_space<vmem>>, %arg5: memref<1x128xf32, #tpu.memory_space<vmem>>, %arg6: memref<64x128xbf16, #tpu.memory_space<vmem>>, %arg7: memref<1x128xf32, #tpu.memory_space<vmem>>, %arg8: memref<32x128xbf16, #tpu.memory_space<vmem>>, %arg9: memref<1x128xf32, #tpu.memory_space<vmem>>, %arg10: memref<1x8x128xf32, #tpu.memory_space<vmem>>, %arg11: memref<2x8x32xf32, #tpu.memory_space<vmem>>, %arg12: memref<2x8x32xf32, #tpu.memory_space<vmem>>) attributes {dimension_semantics = [#tpu.dimension_semantics<arbitrary>], iteration_bounds = array<i64: 16>, scalar_prefetch = 0 : i64, scratch_operands = 0 : i64, tpu.core_type = #tpu.core_type<tc>, window_params = [{transform_indices = @transform_0, window_bounds = array<i64: 1, 8, 32>}, {pipeline_mode = #tpu.pipeline_mode<synchronous>, transform_indices = @transform_1, window_bounds = array<i64: 2, 8, 32>}, {pipeline_mode = #tpu.pipeline_mode<synchronous>, transform_indices = @transform_2, window_bounds = array<i64: 2, 8, 32>}, {pipeline_mode = #tpu.pipeline_mode<synchronous>, transform_indices = @transform_3, window_bounds = array<i64: 64, 128>}, {pipeline_mode = #tpu.pipeline_mode<synchronous>, transform_indices = @transform_4, window_bounds = array<i64: 1, 128>}, {pipeline_mode = #tpu.pipeline_mode<synchronous>, transform_indices = @transform_5, window_bounds = array<i64: 64, 128>}, {pipeline_mode = #tpu.pipeline_mode<synchronous>, transform_indices = @transform_6, window_bounds = array<i64: 1, 128>}, {pipeline_mode = #tpu.pipeline_mode<synchronous>, transform_indices = @transform_7, window_bounds = array<i64: 32, 128>}, {pipeline_mode = #tpu.pipeline_mode<synchronous>, transform_indices = @transform_8, window_bounds = array<i64: 1, 128>}, {transform_indices = @transform_9, window_bounds = array<i64: 1, 8, 128>}, {pipeline_mode = #tpu.pipeline_mode<synchronous>, transform_indices = @transform_10, window_bounds = array<i64: 2, 8, 32>}, {pipeline_mode = #tpu.pipeline_mode<synchronous>, transform_indices = @transform_11, window_bounds = array<i64: 2, 8, 32>}]} {
    %c0_i32 = arith.constant 0 : i32
    %0 = arith.cmpi eq, %arg0, %c0_i32 : i32
    %1 = arith.extui %0 : i1 to i32
    %c0_i32_0 = arith.constant 0 : i32
    %2 = arith.cmpi ne, %1, %c0_i32_0 : i32
    scf.if %2 {
      %c0_51 = arith.constant 0 : index
      %c0_52 = arith.constant 0 : index
      %c0_53 = arith.constant 0 : index
      %97 = vector.load %arg2[%c0_51, %c0_52, %c0_53] : memref<2x8x32xf32, #tpu.memory_space<vmem>>, vector<2x8x32xf32>
      %c0_54 = arith.constant 0 : index
      %c0_55 = arith.constant 0 : index
      %c0_56 = arith.constant 0 : index
      %98 = vector.load %arg11[%c0_54, %c0_55, %c0_56] : memref<2x8x32xf32, #tpu.memory_space<vmem>>, vector<2x8x32xf32>
      tpu.vector_store %arg11[%c0_54, %c0_55, %c0_56], %97 {strides = array<i32>} : memref<2x8x32xf32, #tpu.memory_space<vmem>>, vector<2x8x32xf32>,
      %c0_57 = arith.constant 0 : index
      %c0_58 = arith.constant 0 : index
      %c0_59 = arith.constant 0 : index
      %99 = vector.load %arg3[%c0_57, %c0_58, %c0_59] : memref<2x8x32xf32, #tpu.memory_space<vmem>>, vector<2x8x32xf32>
      %c0_60 = arith.constant 0 : index
      %c0_61 = arith.constant 0 : index
      %c0_62 = arith.constant 0 : index
      %100 = vector.load %arg12[%c0_60, %c0_61, %c0_62] : memref<2x8x32xf32, #tpu.memory_space<vmem>>, vector<2x8x32xf32>
      tpu.vector_store %arg12[%c0_60, %c0_61, %c0_62], %99 {strides = array<i32>} : memref<2x8x32xf32, #tpu.memory_space<vmem>>, vector<2x8x32xf32>,
    } else {
    }
    %c0 = arith.constant 0 : index
    %c0_1 = arith.constant 0 : index
    %c0_2 = arith.constant 0 : index
    %3 = vector.load %arg1[%c0, %c0_1, %c0_2] : memref<1x8x32xbf16, #tpu.memory_space<vmem>>, vector<1x8x32xbf16>
    %4 = vector.shape_cast %3 : vector<1x8x32xbf16> to vector<8x32xbf16>
    %c0_3 = arith.constant 0 : index
    %c0_4 = arith.constant 0 : index
    %c0_5 = arith.constant 0 : index
    %5 = vector.load %arg11[%c0_3, %c0_4, %c0_5] : memref<2x8x32xf32, #tpu.memory_space<vmem>>, vector<1x8x32xf32>
    %6 = vector.shape_cast %5 : vector<1x8x32xf32> to vector<8x32xf32>
    %c0_6 = arith.constant 0 : index
    %c0_7 = arith.constant 0 : index
    %c0_8 = arith.constant 0 : index
    %7 = vector.load %arg12[%c0_6, %c0_7, %c0_8] : memref<2x8x32xf32, #tpu.memory_space<vmem>>, vector<1x8x32xf32>
    %8 = vector.shape_cast %7 : vector<1x8x32xf32> to vector<8x32xf32>
    %9 = arith.extf %4 : vector<8x32xbf16> to vector<8x32xf32>
    %10 = tpu.concatenate %9, %6 in 1 : vector<8x32xf32>, vector<8x32xf32> -> vector<8x64xf32>
    %11 = arith.truncf %10 : vector<8x64xf32> to vector<8x64xbf16>
    %c0_9 = arith.constant 0 : index
    %c0_10 = arith.constant 0 : index
    %12 = vector.load %arg4[%c0_9, %c0_10] : memref<64x128xbf16, #tpu.memory_space<vmem>>, vector<64x128xbf16>
    %cst = arith.constant dense<0.000000e+00> : vector<8x128xf32>
    %13 = tpu.matmul %11, %12, %cst {dimension_numbers = #tpu.dot_dimension_numbers<[1], [0], [0], [1], [0, 0, 1, 1], [], []>} : vector<8x64xbf16>, vector<64x128xbf16>, vector<8x128xf32> -> vector<8x128xf32>
    %c0_11 = arith.constant 0 : index
    %c0_12 = arith.constant 0 : index
    %14 = vector.load %arg5[%c0_11, %c0_12] : memref<1x128xf32, #tpu.memory_space<vmem>>, vector<1x128xf32>
    %15 = vector.broadcast %14 : vector<1x128xf32> to vector<8x128xf32>
    %16 = arith.addf %13, %15 : vector<8x128xf32>
    %17 = tpu.iota {dimensions = array<i32: 1>} : vector<8x128xi32>
    %c64_i32 = arith.constant 64 : i32
    %18 = vector.broadcast %c64_i32 : i32 to vector<8x128xi32>
    %19 = arith.cmpi sge, %17, %18 : vector<8x128xi32>
    %c96_i32 = arith.constant 96 : i32
    %20 = vector.broadcast %c96_i32 : i32 to vector<8x128xi32>
    %21 = arith.cmpi slt, %17, %20 : vector<8x128xi32>
    %22 = arith.andi %19, %21 : vector<8x128xi1>
    %cst_13 = arith.constant 5.000000e-01 : f32
    %23 = vector.broadcast %cst_13 : f32 to vector<8x128xf32>
    %24 = arith.mulf %23, %16 : vector<8x128xf32>
    %25 = arith.select %22, %16, %24 : vector<8x128xi1>, vector<8x128xf32>
    %26 = math.tanh %25 : vector<8x128xf32>
    %cst_14 = arith.constant 5.000000e-01 : f32
    %27 = vector.broadcast %cst_14 : f32 to vector<8x128xf32>
    %28 = arith.mulf %27, %26 : vector<8x128xf32>
    %cst_15 = arith.constant 5.000000e-01 : f32
    %29 = vector.broadcast %cst_15 : f32 to vector<8x128xf32>
    %30 = arith.addf %28, %29 : vector<8x128xf32>
    %31 = arith.select %22, %26, %30 : vector<8x128xi1>, vector<8x128xf32>
    %32 = vector.extract_strided_slice %31 {offsets = [0, 0], sizes = [8, 32], strides = [1, 1]} : vector<8x128xf32> to vector<8x32xf32>
    %33 = vector.extract_strided_slice %31 {offsets = [0, 32], sizes = [8, 32], strides = [1, 1]} : vector<8x128xf32> to vector<8x32xf32>
    %34 = vector.extract_strided_slice %31 {offsets = [0, 64], sizes = [8, 32], strides = [1, 1]} : vector<8x128xf32> to vector<8x32xf32>
    %35 = vector.extract_strided_slice %31 {offsets = [0, 96], sizes = [8, 32], strides = [1, 1]} : vector<8x128xf32> to vector<8x32xf32>
    %36 = arith.mulf %33, %8 : vector<8x32xf32>
    %37 = arith.mulf %32, %34 : vector<8x32xf32>
    %38 = arith.addf %36, %37 : vector<8x32xf32>
    %39 = math.tanh %38 : vector<8x32xf32>
    %40 = arith.mulf %35, %39 : vector<8x32xf32>
    %c1 = arith.constant 1 : index
    %c0_16 = arith.constant 0 : index
    %c0_17 = arith.constant 0 : index
    %41 = vector.load %arg11[%c1, %c0_16, %c0_17] : memref<2x8x32xf32, #tpu.memory_space<vmem>>, vector<1x8x32xf32>
    %42 = vector.shape_cast %41 : vector<1x8x32xf32> to vector<8x32xf32>
    %c1_18 = arith.constant 1 : index
    %c0_19 = arith.constant 0 : index
    %c0_20 = arith.constant 0 : index
    %43 = vector.load %arg12[%c1_18, %c0_19, %c0_20] : memref<2x8x32xf32, #tpu.memory_space<vmem>>, vector<1x8x32xf32>
    %44 = vector.shape_cast %43 : vector<1x8x32xf32> to vector<8x32xf32>
    %45 = tpu.concatenate %40, %42 in 1 : vector<8x32xf32>, vector<8x32xf32> -> vector<8x64xf32>
    %46 = arith.truncf %45 : vector<8x64xf32> to vector<8x64xbf16>
    %c0_21 = arith.constant 0 : index
    %c0_22 = arith.constant 0 : index
    %47 = vector.load %arg6[%c0_21, %c0_22] : memref<64x128xbf16, #tpu.memory_space<vmem>>, vector<64x128xbf16>
    %cst_23 = arith.constant dense<0.000000e+00> : vector<8x128xf32>
    %48 = tpu.matmul %46, %47, %cst_23 {dimension_numbers = #tpu.dot_dimension_numbers<[1], [0], [0], [1], [0, 0, 1, 1], [], []>} : vector<8x64xbf16>, vector<64x128xbf16>, vector<8x128xf32> -> vector<8x128xf32>
    %c0_24 = arith.constant 0 : index
    %c0_25 = arith.constant 0 : index
    %49 = vector.load %arg7[%c0_24, %c0_25] : memref<1x128xf32, #tpu.memory_space<vmem>>, vector<1x128xf32>
    %50 = vector.broadcast %49 : vector<1x128xf32> to vector<8x128xf32>
    %51 = arith.addf %48, %50 : vector<8x128xf32>
    %52 = tpu.iota {dimensions = array<i32: 1>} : vector<8x128xi32>
    %c64_i32_26 = arith.constant 64 : i32
    %53 = vector.broadcast %c64_i32_26 : i32 to vector<8x128xi32>
    %54 = arith.cmpi sge, %52, %53 : vector<8x128xi32>
    %c96_i32_27 = arith.constant 96 : i32
    %55 = vector.broadcast %c96_i32_27 : i32 to vector<8x128xi32>
    %56 = arith.cmpi slt, %52, %55 : vector<8x128xi32>
    %57 = arith.andi %54, %56 : vector<8x128xi1>
    %cst_28 = arith.constant 5.000000e-01 : f32
    %58 = vector.broadcast %cst_28 : f32 to vector<8x128xf32>
    %59 = arith.mulf %58, %51 : vector<8x128xf32>
    %60 = arith.select %57, %51, %59 : vector<8x128xi1>, vector<8x128xf32>
    %61 = math.tanh %60 : vector<8x128xf32>
    %cst_29 = arith.constant 5.000000e-01 : f32
    %62 = vector.broadcast %cst_29 : f32 to vector<8x128xf32>
    %63 = arith.mulf %62, %61 : vector<8x128xf32>
    %cst_30 = arith.constant 5.000000e-01 : f32
    %64 = vector.broadcast %cst_30 : f32 to vector<8x128xf32>
    %65 = arith.addf %63, %64 : vector<8x128xf32>
    %66 = arith.select %57, %61, %65 : vector<8x128xi1>, vector<8x128xf32>
    %67 = vector.extract_strided_slice %66 {offsets = [0, 0], sizes = [8, 32], strides = [1, 1]} : vector<8x128xf32> to vector<8x32xf32>
    %68 = vector.extract_strided_slice %66 {offsets = [0, 32], sizes = [8, 32], strides = [1, 1]} : vector<8x128xf32> to vector<8x32xf32>
    %69 = vector.extract_strided_slice %66 {offsets = [0, 64], sizes = [8, 32], strides = [1, 1]} : vector<8x128xf32> to vector<8x32xf32>
    %70 = vector.extract_strided_slice %66 {offsets = [0, 96], sizes = [8, 32], strides = [1, 1]} : vector<8x128xf32> to vector<8x32xf32>
    %71 = arith.mulf %68, %44 : vector<8x32xf32>
    %72 = arith.mulf %67, %69 : vector<8x32xf32>
    %73 = arith.addf %71, %72 : vector<8x32xf32>
    %74 = math.tanh %73 : vector<8x32xf32>
    %75 = arith.mulf %70, %74 : vector<8x32xf32>
    %c0_31 = arith.constant 0 : index
    %c0_32 = arith.constant 0 : index
    %c0_33 = arith.constant 0 : index
    %76 = vector.load %arg11[%c0_31, %c0_32, %c0_33] : memref<2x8x32xf32, #tpu.memory_space<vmem>>, vector<1x8x32xf32>
    %77 = vector.shape_cast %76 : vector<1x8x32xf32> to vector<8x32xf32>
    %78 = vector.shape_cast %40 : vector<8x32xf32> to vector<1x8x32xf32>
    tpu.vector_store %arg11[%c0_31, %c0_32, %c0_33], %78 {strides = array<i32>} : memref<2x8x32xf32, #tpu.memory_space<vmem>>, vector<1x8x32xf32>,
    %c1_34 = arith.constant 1 : index
    %c0_35 = arith.constant 0 : index
    %c0_36 = arith.constant 0 : index
    %79 = vector.load %arg11[%c1_34, %c0_35, %c0_36] : memref<2x8x32xf32, #tpu.memory_space<vmem>>, vector<1x8x32xf32>
    %80 = vector.shape_cast %79 : vector<1x8x32xf32> to vector<8x32xf32>
    %81 = vector.shape_cast %75 : vector<8x32xf32> to vector<1x8x32xf32>
    tpu.vector_store %arg11[%c1_34, %c0_35, %c0_36], %81 {strides = array<i32>} : memref<2x8x32xf32, #tpu.memory_space<vmem>>, vector<1x8x32xf32>,
    %c0_37 = arith.constant 0 : index
    %c0_38 = arith.constant 0 : index
    %c0_39 = arith.constant 0 : index
    %82 = vector.load %arg12[%c0_37, %c0_38, %c0_39] : memref<2x8x32xf32, #tpu.memory_space<vmem>>, vector<1x8x32xf32>
    %83 = vector.shape_cast %82 : vector<1x8x32xf32> to vector<8x32xf32>
    %84 = vector.shape_cast %38 : vector<8x32xf32> to vector<1x8x32xf32>
    tpu.vector_store %arg12[%c0_37, %c0_38, %c0_39], %84 {strides = array<i32>} : memref<2x8x32xf32, #tpu.memory_space<vmem>>, vector<1x8x32xf32>,
    %c1_40 = arith.constant 1 : index
    %c0_41 = arith.constant 0 : index
    %c0_42 = arith.constant 0 : index
    %85 = vector.load %arg12[%c1_40, %c0_41, %c0_42] : memref<2x8x32xf32, #tpu.memory_space<vmem>>, vector<1x8x32xf32>
    %86 = vector.shape_cast %85 : vector<1x8x32xf32> to vector<8x32xf32>
    %87 = vector.shape_cast %73 : vector<8x32xf32> to vector<1x8x32xf32>
    tpu.vector_store %arg12[%c1_40, %c0_41, %c0_42], %87 {strides = array<i32>} : memref<2x8x32xf32, #tpu.memory_space<vmem>>, vector<1x8x32xf32>,
    %88 = arith.truncf %75 : vector<8x32xf32> to vector<8x32xbf16>
    %c0_43 = arith.constant 0 : index
    %c0_44 = arith.constant 0 : index
    %89 = vector.load %arg8[%c0_43, %c0_44] : memref<32x128xbf16, #tpu.memory_space<vmem>>, vector<32x128xbf16>
    %cst_45 = arith.constant dense<0.000000e+00> : vector<8x128xf32>
    %90 = tpu.matmul %88, %89, %cst_45 {dimension_numbers = #tpu.dot_dimension_numbers<[1], [0], [0], [1], [0, 0, 1, 1], [], []>} : vector<8x32xbf16>, vector<32x128xbf16>, vector<8x128xf32> -> vector<8x128xf32>
    %c0_46 = arith.constant 0 : index
    %c0_47 = arith.constant 0 : index
    %91 = vector.load %arg9[%c0_46, %c0_47] : memref<1x128xf32, #tpu.memory_space<vmem>>, vector<1x128xf32>
    %92 = vector.broadcast %91 : vector<1x128xf32> to vector<8x128xf32>
    %93 = arith.addf %90, %92 : vector<8x128xf32>
    %c0_48 = arith.constant 0 : index
    %c0_49 = arith.constant 0 : index
    %c0_50 = arith.constant 0 : index
    %94 = vector.load %arg10[%c0_48, %c0_49, %c0_50] : memref<1x8x128xf32, #tpu.memory_space<vmem>>, vector<1x8x128xf32>
    %95 = vector.shape_cast %94 : vector<1x8x128xf32> to vector<8x128xf32>
    %96 = vector.shape_cast %93 : vector<8x128xf32> to vector<1x8x128xf32>
    tpu.vector_store %arg10[%c0_48, %c0_49, %c0_50], %96 {strides = array<i32>} : memref<1x8x128xf32, #tpu.memory_space<vmem>>, vector<1x8x128xf32>,
    return
  }
  func.func @transform_0(%arg0: i32) -> (i32, i32, i32) {
    %c0_i32 = arith.constant 0 : i32
    %c0_i32_0 = arith.constant 0 : i32
    %c0_i32_1 = arith.constant 0 : i32
    return %arg0, %c0_i32, %c0_i32_0 : i32, i32, i32
  }
  func.func @transform_1(%arg0: i32) -> (i32, i32, i32) {
    %c0_i32 = arith.constant 0 : i32
    %c0_i32_0 = arith.constant 0 : i32
    %c0_i32_1 = arith.constant 0 : i32
    %c0_i32_2 = arith.constant 0 : i32
    return %c0_i32, %c0_i32_0, %c0_i32_1 : i32, i32, i32
  }
  func.func @transform_2(%arg0: i32) -> (i32, i32, i32) {
    %c0_i32 = arith.constant 0 : i32
    %c0_i32_0 = arith.constant 0 : i32
    %c0_i32_1 = arith.constant 0 : i32
    %c0_i32_2 = arith.constant 0 : i32
    return %c0_i32, %c0_i32_0, %c0_i32_1 : i32, i32, i32
  }
  func.func @transform_3(%arg0: i32) -> (i32, i32) {
    %c0_i32 = arith.constant 0 : i32
    %c0_i32_0 = arith.constant 0 : i32
    %c0_i32_1 = arith.constant 0 : i32
    return %c0_i32, %c0_i32_0 : i32, i32
  }
  func.func @transform_4(%arg0: i32) -> (i32, i32) {
    %c0_i32 = arith.constant 0 : i32
    %c0_i32_0 = arith.constant 0 : i32
    %c0_i32_1 = arith.constant 0 : i32
    return %c0_i32, %c0_i32_0 : i32, i32
  }
  func.func @transform_5(%arg0: i32) -> (i32, i32) {
    %c0_i32 = arith.constant 0 : i32
    %c0_i32_0 = arith.constant 0 : i32
    %c0_i32_1 = arith.constant 0 : i32
    return %c0_i32, %c0_i32_0 : i32, i32
  }
  func.func @transform_6(%arg0: i32) -> (i32, i32) {
    %c0_i32 = arith.constant 0 : i32
    %c0_i32_0 = arith.constant 0 : i32
    %c0_i32_1 = arith.constant 0 : i32
    return %c0_i32, %c0_i32_0 : i32, i32
  }
  func.func @transform_7(%arg0: i32) -> (i32, i32) {
    %c0_i32 = arith.constant 0 : i32
    %c0_i32_0 = arith.constant 0 : i32
    %c0_i32_1 = arith.constant 0 : i32
    return %c0_i32, %c0_i32_0 : i32, i32
  }
  func.func @transform_8(%arg0: i32) -> (i32, i32) {
    %c0_i32 = arith.constant 0 : i32
    %c0_i32_0 = arith.constant 0 : i32
    %c0_i32_1 = arith.constant 0 : i32
    return %c0_i32, %c0_i32_0 : i32, i32
  }
  func.func @transform_9(%arg0: i32) -> (i32, i32, i32) {
    %c0_i32 = arith.constant 0 : i32
    %c0_i32_0 = arith.constant 0 : i32
    %c0_i32_1 = arith.constant 0 : i32
    return %arg0, %c0_i32, %c0_i32_0 : i32, i32, i32
  }
  func.func @transform_10(%arg0: i32) -> (i32, i32, i32) {
    %c0_i32 = arith.constant 0 : i32
    %c0_i32_0 = arith.constant 0 : i32
    %c0_i32_1 = arith.constant 0 : i32
    %c0_i32_2 = arith.constant 0 : i32
    return %c0_i32, %c0_i32_0, %c0_i32_1 : i32, i32, i32
  }
  func.func @transform_11(%arg0: i32) -> (i32, i32, i32) {
    %c0_i32 = arith.constant 0 : i32
    %c0_i32_0 = arith.constant 0 : i32
    %c0_i32_1 = arith.constant 0 : i32
    %c0_i32_2 = arith.constant 0 : i32
    return %c0_i32, %c0_i32_0, %c0_i32_1 : i32, i32, i32
  }
}

</mosaic_0001>

<llo_original>
// kernel: tpu_custom_call.1
$region0: #{tpu_custom_call.1}
  #allocation0 [shape = 'u32[]', space=smem, size = 0x4, offset = 0x4, fixed_abs, tag = 'smem constant byte address 0x4 - core index']
  #allocation1 [shape = 'u32[72,128]{1,0:T(1,128)}', space=vmem, size = 0x9000, scoped, tag = 'internal scratch']
  %s0 = inlined_call_operand.hbm [shape: bf16[16,8,32], index: 0, kind: input, shape index: {}]
  %s1 = inlined_call_operand.hbm [shape: f32[2,8,32], index: 1, kind: input, shape index: {}]
  %s2 = inlined_call_operand.hbm [shape: f32[2,8,32], index: 2, kind: input, shape index: {}]
  %s3 = inlined_call_operand.hbm [shape: bf16[64,128], index: 3, kind: input, shape index: {}]
  %s4 = inlined_call_operand.vmem [shape: f32[1,128], index: 4, kind: input, shape index: {}]
  %s5 = inlined_call_operand.hbm [shape: bf16[64,128], index: 5, kind: input, shape index: {}]
  %s6 = inlined_call_operand.vmem [shape: f32[1,128], index: 6, kind: input, shape index: {}]
  %s7 = inlined_call_operand.hbm [shape: bf16[32,128], index: 7, kind: input, shape index: {}]
  %s8 = inlined_call_operand.vmem [shape: f32[1,128], index: 8, kind: input, shape index: {}]
  %s9 = inlined_call_operand.hbm [shape: f32[16,8,128], index: 9, kind: output, shape index: {0}]
  %s10 = inlined_call_operand.hbm [shape: f32[2,8,32], index: 10, kind: output, shape index: {1}]
  %s11 = inlined_call_operand.hbm [shape: f32[2,8,32], index: 11, kind: output, shape index: {2}]
  %12 = xla_tuple %s9, %s10, %s11
  %s13 = sld [smem:[#allocation0]]
  $region113: #{tpu_custom_call.1} parent=0
    _
  %s15 = ssub.s32 1, %s13
  %s16 = scalar_select 0, %s15, %s13
  $region1: #{tpu_custom_call.1} parent=0
    #allocation2 [shape = 'u8[4096]{0}', space=vmem, size = 0x1000, scoped, tag = 'input window, operand 0']
    #allocation3 [shape = 's32[2]{0}', space=sflag, size = 0x8, scoped, tag = 'scoped memory for tpu_custom_call.1']
    #allocation4 [shape = 's32[2]{0}', space=sflag, size = 0x8, scoped, tag = 'scoped memory for tpu_custom_call.1']
    #allocation5 [shape = 'u8[8192]{0}', space=vmem, size = 0x2000, scoped, tag = 'input window, operand 1, single buffered']
    #allocation6 [shape = 's32[1]{0}', space=sflag, size = 0x4, scoped, tag = 'scoped memory for tpu_custom_call.1']
    #allocation7 [shape = 'u8[8192]{0}', space=vmem, size = 0x2000, scoped, tag = 'input window, operand 2, single buffered']
    #allocation8 [shape = 'u8[16384]{0}', space=vmem, size = 0x4000, scoped, tag = 'input window, operand 3, single buffered']
    #allocation9 [shape = 's32[1]{0}', space=sflag, size = 0x4, scoped, tag = 'scoped memory for tpu_custom_call.1']
    #allocation10 [shape = 'u8[16384]{0}', space=vmem, size = 0x4000, scoped, tag = 'input window, operand 5, single buffered']
    #allocation11 [shape = 'u8[8192]{0}', space=vmem, size = 0x2000, scoped, tag = 'input window, operand 7, single buffered']
    #allocation12 [shape = 's32[1]{0}', space=sflag, size = 0x4, scoped, tag = 'scoped memory for tpu_custom_call.1']
    #allocation13 [shape = 'u8[8192]{0}', space=vmem, size = 0x2000, scoped, tag = 'output window, operand 0']
    #allocation14 [shape = 'u8[8192]{0}', space=vmem, size = 0x2000, scoped, tag = 'output window, operand 1, single buffered']
    #allocation15 [shape = 's32[1]{0}', space=sflag, size = 0x4, scoped, tag = 'scoped memory for tpu_custom_call.1']
    #allocation16 [shape = 'u8[8192]{0}', space=vmem, size = 0x2000, scoped, tag = 'output window, operand 2, single buffered']
    %17 = vsyncpa [#allocation3], 0
    %s18 = scalar_lea.sflag [#allocation3], 1
    %19 = vsyncpa %s18, 0
    %20 = vsyncpa [#allocation6], 0
    %21 = vsyncpa [#allocation9], 0
    %22 = vsyncpa [#allocation12], 0
    %23 = vsyncpa [#allocation4], 0
    %s24 = scalar_lea.sflag [#allocation4], 1
    %25 = vsyncpa %s24, 0
    %26 = vsyncpa [#allocation15], 0
    loop: start=0, step=1, limit=18
    $region2: #{tpu_custom_call.1} parent=1 // loop_pre_header
      _
    $region3: #{tpu_custom_call.1} parent=1 // loop_header
      %s28 = sphi 0, %s32
      %p29 = scmp.ge.s32.totalorder %s28, 18
      %s38 = sphi 0, %s40
      %s41 = sphi 0, %s38
      %s42 = sphi 0, %s41
      %s58 = sphi 0, %s42
      %s62 = sphi 0, %s62
      %s64 = sphi 0, %s62
      %s65 = sphi 0, %s64
      %s79 = sphi 0, %s65
      %s83 = sphi 0, %s83
      %s85 = sphi 0, %s83
      %s86 = sphi 0, %s85
      %s100 = sphi 0, %s86
      %s104 = sphi 0, %s104
      %s106 = sphi 0, %s104
      %s107 = sphi 0, %s106
      %s121 = sphi 0, %s107
      %s125 = sphi 0, %s125
      %s127 = sphi 0, %s125
      %s128 = sphi 0, %s127
      %s142 = sphi 0, %s128
      %s146 = sphi 0, %s146
      %s148 = sphi 0, %s146
      %s149 = sphi 0, %s148
      %s163 = sphi 0, %s149
      %s167 = sphi 0, %s167
      %s169 = sphi 0, %s167
      %s170 = sphi 0, %s169
      %s184 = sphi 0, %s170
      %s188 = sphi 0, %s188
      %s190 = sphi 0, %s188
      %s191 = sphi 0, %s190
      %s205 = sphi 0, %s191
      %s209 = sphi 0, %s209
      %s211 = sphi 0, %s209
      %s212 = sphi 0, %s211
      %s226 = sphi 0, %s212
      %s232 = sphi 0, %s234
      %s235 = sphi 0, %s232
      %s236 = sphi 0, %s235
      %s252 = sphi 0, %s236
      %s256 = sphi 0, %s256
      %s258 = sphi 0, %s256
      %s259 = sphi 0, %s258
      %s273 = sphi 0, %s259
      %s277 = sphi 0, %s277
      %s279 = sphi 0, %s277
      %s280 = sphi 0, %s279
      %s294 = sphi 0, %s280
    $region4: #{tpu_custom_call.1} parent=1 // loop_header_branch
      %31 = sbr.rel (%p29) target = $region8
    $region5: #{tpu_custom_call.1} parent=1 // loop_body
      %s33 = ssub.s32 %s28, 1
      %s34 = ssub.s32 %s28, 2
      %s35 = sadd.s32 %s28, 1
      %s36 = ssub.s32 %s28, %s35
      %p37 = scmp.eq.s32.totalorder %s36, 0
      %s39 = sadd.s32 %s38, 1
      %s40 = scalar_select %p37, %s38, %s39
      %p43 = pneg %p37
      %p44 = scmp.eq.s32.totalorder %s28, 15
      %p45 = por %p43, %p44
      %p46 = scmp.ne.s32.totalorder %s38, %s41
      %p47 = scmp.eq.s32.totalorder %s28, 0
      %p48 = por %p46, %p47
      %p49 = scmp.ne.s32.totalorder %s38, %s41
      %p50 = scmp.eq.s32.totalorder %s33, 15
      %p51 = por %p49, %p50
      %p52 = scmp.ne.s32.totalorder %s41, %s42
      %p53 = scmp.eq.s32.totalorder %s33, 0
      %p54 = por %p52, %p53
      %p55 = scmp.ne.s32.totalorder %s41, %s42
      %p56 = scmp.eq.s32.totalorder %s34, 15
      %p57 = por %p55, %p56
      %p59 = scmp.ne.s32.totalorder %s42, %s58
      %p60 = scmp.eq.s32.totalorder %s34, 0
      %p61 = por %p59, %p60
      %s63 = sadd.s32 %s62, 1
      %p66 = scmp.eq.s32.totalorder %s28, 15
      %p67 = scmp.ne.s32.totalorder %s62, %s64
      %p68 = scmp.eq.s32.totalorder %s28, 0
      %p69 = por %p67, %p68
      %p70 = scmp.ne.s32.totalorder %s62, %s64
      %p71 = scmp.eq.s32.totalorder %s33, 15
      %p72 = por %p70, %p71
      %p73 = scmp.ne.s32.totalorder %s64, %s65
      %p74 = scmp.eq.s32.totalorder %s33, 0
      %p75 = por %p73, %p74
      %p76 = scmp.ne.s32.totalorder %s64, %s65
      %p77 = scmp.eq.s32.totalorder %s34, 15
      %p78 = por %p76, %p77
      %p80 = scmp.ne.s32.totalorder %s65, %s79
      %p81 = scmp.eq.s32.totalorder %s34, 0
      %p82 = por %p80, %p81
      %s84 = sadd.s32 %s83, 1
      %p87 = scmp.eq.s32.totalorder %s28, 15
      %p88 = scmp.ne.s32.totalorder %s83, %s85
      %p89 = scmp.eq.s32.totalorder %s28, 0
      %p90 = por %p88, %p89
      %p91 = scmp.ne.s32.totalorder %s83, %s85
      %p92 = scmp.eq.s32.totalorder %s33, 15
      %p93 = por %p91, %p92
      %p94 = scmp.ne.s32.totalorder %s85, %s86
      %p95 = scmp.eq.s32.totalorder %s33, 0
      %p96 = por %p94, %p95
      %p97 = scmp.ne.s32.totalorder %s85, %s86
      %p98 = scmp.eq.s32.totalorder %s34, 15
      %p99 = por %p97, %p98
      %p101 = scmp.ne.s32.totalorder %s86, %s100
      %p102 = scmp.eq.s32.totalorder %s34, 0
      %p103 = por %p101, %p102
      %s105 = sadd.s32 %s104, 1
      %p108 = scmp.eq.s32.totalorder %s28, 15
      %p109 = scmp.ne.s32.totalorder %s104, %s106
      %p110 = scmp.eq.s32.totalorder %s28, 0
      %p111 = por %p109, %p110
      %p112 = scmp.ne.s32.totalorder %s104, %s106
      %p113 = scmp.eq.s32.totalorder %s33, 15
      %p114 = por %p112, %p113
      %p115 = scmp.ne.s32.totalorder %s106, %s107
      %p116 = scmp.eq.s32.totalorder %s33, 0
      %p117 = por %p115, %p116
      %p118 = scmp.ne.s32.totalorder %s106, %s107
      %p119 = scmp.eq.s32.totalorder %s34, 15
      %p120 = por %p118, %p119
      %p122 = scmp.ne.s32.totalorder %s107, %s121
      %p123 = scmp.eq.s32.totalorder %s34, 0
      %p124 = por %p122, %p123
      %s126 = sadd.s32 %s125, 1
      %p129 = scmp.eq.s32.totalorder %s28, 15
      %p130 = scmp.ne.s32.totalorder %s125, %s127
      %p131 = scmp.eq.s32.totalorder %s28, 0
      %p132 = por %p130, %p131
      %p133 = scmp.ne.s32.totalorder %s125, %s127
      %p134 = scmp.eq.s32.totalorder %s33, 15
      %p135 = por %p133, %p134
      %p136 = scmp.ne.s32.totalorder %s127, %s128
      %p137 = scmp.eq.s32.totalorder %s33, 0
      %p138 = por %p136, %p137
      %p139 = scmp.ne.s32.totalorder %s127, %s128
      %p140 = scmp.eq.s32.totalorder %s34, 15
      %p141 = por %p139, %p140
      %p143 = scmp.ne.s32.totalorder %s128, %s142
      %p144 = scmp.eq.s32.totalorder %s34, 0
      %p145 = por %p143, %p144
      %s147 = sadd.s32 %s146, 1
      %p150 = scmp.eq.s32.totalorder %s28, 15
      %p151 = scmp.ne.s32.totalorder %s146, %s148
      %p152 = scmp.eq.s32.totalorder %s28, 0
      %p153 = por %p151, %p152
      %p154 = scmp.ne.s32.totalorder %s146, %s148
      %p155 = scmp.eq.s32.totalorder %s33, 15
      %p156 = por %p154, %p155
      %p157 = scmp.ne.s32.totalorder %s148, %s149
      %p158 = scmp.eq.s32.totalorder %s33, 0
      %p159 = por %p157, %p158
      %p160 = scmp.ne.s32.totalorder %s148, %s149
      %p161 = scmp.eq.s32.totalorder %s34, 15
      %p162 = por %p160, %p161
      %p164 = scmp.ne.s32.totalorder %s149, %s163
      %p165 = scmp.eq.s32.totalorder %s34, 0
      %p166 = por %p164, %p165
      %s168 = sadd.s32 %s167, 1
      %p171 = scmp.eq.s32.totalorder %s28, 15
      %p172 = scmp.ne.s32.totalorder %s167, %s169
      %p173 = scmp.eq.s32.totalorder %s28, 0
      %p174 = por %p172, %p173
      %p175 = scmp.ne.s32.totalorder %s167, %s169
      %p176 = scmp.eq.s32.totalorder %s33, 15
      %p177 = por %p175, %p176
      %p178 = scmp.ne.s32.totalorder %s169, %s170
      %p179 = scmp.eq.s32.totalorder %s33, 0
      %p180 = por %p178, %p179
      %p181 = scmp.ne.s32.totalorder %s169, %s170
      %p182 = scmp.eq.s32.totalorder %s34, 15
      %p183 = por %p181, %p182
      %p185 = scmp.ne.s32.totalorder %s170, %s184
      %p186 = scmp.eq.s32.totalorder %s34, 0
      %p187 = por %p185, %p186
      %s189 = sadd.s32 %s188, 1
      %p192 = scmp.eq.s32.totalorder %s28, 15
      %p193 = scmp.ne.s32.totalorder %s188, %s190
      %p194 = scmp.eq.s32.totalorder %s28, 0
      %p195 = por %p193, %p194
      %p196 = scmp.ne.s32.totalorder %s188, %s190
      %p197 = scmp.eq.s32.totalorder %s33, 15
      %p198 = por %p196, %p197
      %p199 = scmp.ne.s32.totalorder %s190, %s191
      %p200 = scmp.eq.s32.totalorder %s33, 0
      %p201 = por %p199, %p200
      %p202 = scmp.ne.s32.totalorder %s190, %s191
      %p203 = scmp.eq.s32.totalorder %s34, 15
      %p204 = por %p202, %p203
      %p206 = scmp.ne.s32.totalorder %s191, %s205
      %p207 = scmp.eq.s32.totalorder %s34, 0
      %p208 = por %p206, %p207
      %s210 = sadd.s32 %s209, 1
      %p213 = scmp.eq.s32.totalorder %s28, 15
      %p214 = scmp.ne.s32.totalorder %s209, %s211
      %p215 = scmp.eq.s32.totalorder %s28, 0
      %p216 = por %p214, %p215
      %p217 = scmp.ne.s32.totalorder %s209, %s211
      %p218 = scmp.eq.s32.totalorder %s33, 15
      %p219 = por %p217, %p218
      %p220 = scmp.ne.s32.totalorder %s211, %s212
      %p221 = scmp.eq.s32.totalorder %s33, 0
      %p222 = por %p220, %p221
      %p223 = scmp.ne.s32.totalorder %s211, %s212
      %p224 = scmp.eq.s32.totalorder %s34, 15
      %p225 = por %p223, %p224
      %p227 = scmp.ne.s32.totalorder %s212, %s226
      %p228 = scmp.eq.s32.totalorder %s34, 0
      %p229 = por %p227, %p228
      %s230 = ssub.s32 %s28, %s35
      %p231 = scmp.eq.s32.totalorder %s230, 0
      %s233 = sadd.s32 %s232, 1
      %s234 = scalar_select %p231, %s232, %s233
      %p237 = pneg %p231
      %p238 = scmp.eq.s32.totalorder %s28, 15
      %p239 = por %p237, %p238
      %p240 = scmp.ne.s32.totalorder %s232, %s235
      %p241 = scmp.eq.s32.totalorder %s28, 0
      %p242 = por %p240, %p241
      %p243 = scmp.ne.s32.totalorder %s232, %s235
      %p244 = scmp.eq.s32.totalorder %s33, 15
      %p245 = por %p243, %p244
      %p246 = scmp.ne.s32.totalorder %s235, %s236
      %p247 = scmp.eq.s32.totalorder %s33, 0
      %p248 = por %p246, %p247
      %p249 = scmp.ne.s32.totalorder %s235, %s236
      %p250 = scmp.eq.s32.totalorder %s34, 15
      %p251 = por %p249, %p250
      %p253 = scmp.ne.s32.totalorder %s236, %s252
      %p254 = scmp.eq.s32.totalorder %s34, 0
      %p255 = por %p253, %p254
      %s257 = sadd.s32 %s256, 1
      %p260 = scmp.eq.s32.totalorder %s28, 15
      %p261 = scmp.ne.s32.totalorder %s256, %s258
      %p262 = scmp.eq.s32.totalorder %s28, 0
      %p263 = por %p261, %p262
      %p264 = scmp.ne.s32.totalorder %s256, %s258
      %p265 = scmp.eq.s32.totalorder %s33, 15
      %p266 = por %p264, %p265
      %p267 = scmp.ne.s32.totalorder %s258, %s259
      %p268 = scmp.eq.s32.totalorder %s33, 0
      %p269 = por %p267, %p268
      %p270 = scmp.ne.s32.totalorder %s258, %s259
      %p271 = scmp.eq.s32.totalorder %s34, 15
      %p272 = por %p270, %p271
      %p274 = scmp.ne.s32.totalorder %s259, %s273
      %p275 = scmp.eq.s32.totalorder %s34, 0
      %p276 = por %p274, %p275
      %s278 = sadd.s32 %s277, 1
      %p281 = scmp.eq.s32.totalorder %s28, 15
      %p282 = scmp.ne.s32.totalorder %s277, %s279
      %p283 = scmp.eq.s32.totalorder %s28, 0
      %p284 = por %p282, %p283
      %p285 = scmp.ne.s32.totalorder %s277, %s279
      %p286 = scmp.eq.s32.totalorder %s33, 15
      %p287 = por %p285, %p286
      %p288 = scmp.ne.s32.totalorder %s279, %s280
      %p289 = scmp.eq.s32.totalorder %s33, 0
      %p290 = por %p288, %p289
      %p291 = scmp.ne.s32.totalorder %s279, %s280
      %p292 = scmp.eq.s32.totalorder %s34, 15
      %p293 = por %p291, %p292
      %p295 = scmp.ne.s32.totalorder %s280, %s294
      %p296 = scmp.eq.s32.totalorder %s34, 0
      %p297 = por %p295, %p296
      %p298 = scmp.le.s32.totalorder 1, %s28
      %p299 = scmp.lt.s32.totalorder %s28, 17
      %p300 = pnand %p298, %p299
      %p301 = pneg %p300
      // Predicated region
      $region9: #{tpu_custom_call.1} parent=5 // pred_check
        _
      $region10: #{tpu_custom_call.1} parent=5 // pred_check_branch
        %303 = sbr.rel (%p300) target = $region12
      $region11: #{tpu_custom_call.1} parent=5 // pred_region
        %s304 = ssub.s32 %s28, 1
        // Predicated region
        $region13: #{tpu_custom_call.1} parent=11 // pred_check
          %p305 = pneg %p75
        $region14: #{tpu_custom_call.1} parent=11 // pred_check_branch
          %307 = sbr.rel (%p305) target = $region16
        $region15: #{tpu_custom_call.1} parent=11 // pred_region
          %309 = vsyncadd [#allocation6], 0
          %s310 = sshll.u32 %s1, 4
          %s311 = int_to_ptr.hbm [resolvable:$true] %s310
          %s312 = sshll.u32 [#allocation5], 4
          %s313 = int_to_ptr.vmem [resolvable:$true] %s312
          %318 = dma.hbm_to_vmem [thread:$0]  %s311, 256, %s313, [#allocation6], 128, 128, 8
        $region16: #{tpu_custom_call.1} parent=11 // pred_fallthru
          _
        // Predicated region
        $region17: #{tpu_custom_call.1} parent=11 // pred_check
          %p319 = pneg %p96
        $region18: #{tpu_custom_call.1} parent=11 // pred_check_branch
          %321 = sbr.rel (%p319) target = $region20
        $region19: #{tpu_custom_call.1} parent=11 // pred_region
          %323 = vsyncadd [#allocation6], 0
          %s324 = sshll.u32 %s2, 4
          %s325 = int_to_ptr.hbm [resolvable:$true] %s324
          %s326 = sshll.u32 [#allocation7], 4
          %s327 = int_to_ptr.vmem [resolvable:$true] %s326
          %332 = dma.hbm_to_vmem [thread:$0]  %s325, 256, %s327, [#allocation6], 128, 128, 8
        $region20: #{tpu_custom_call.1} parent=11 // pred_fallthru
          _
        // Predicated region
        $region21: #{tpu_custom_call.1} parent=11 // pred_check
          %p333 = pneg %p117
        $region22: #{tpu_custom_call.1} parent=11 // pred_check_branch
          %335 = sbr.rel (%p333) target = $region24
        $region23: #{tpu_custom_call.1} parent=11 // pred_region
          %337 = vsyncadd [#allocation9], 0
          %s338 = sshll.u32 %s3, 4
          %s339 = int_to_ptr.hbm [resolvable:$true] %s338
          %s340 = sshll.u32 [#allocation8], 4
          %s341 = int_to_ptr.vmem [resolvable:$true] %s340
          %346 = dma.hbm_to_vmem [thread:$0]  %s339, 512, %s341, [#allocation9], 64, 64, 4
        $region24: #{tpu_custom_call.1} parent=11 // pred_fallthru
          _
        // Predicated region
        $region25: #{tpu_custom_call.1} parent=11 // pred_check
          %p347 = pneg %p138
        $region26: #{tpu_custom_call.1} parent=11 // pred_check_branch
          %349 = sbr.rel (%p347) target = $region28
        $region27: #{tpu_custom_call.1} parent=11 // pred_region
          _
        $region28: #{tpu_custom_call.1} parent=11 // pred_fallthru
          _
        // Predicated region
        $region29: #{tpu_custom_call.1} parent=11 // pred_check
          %p350 = pneg %p159
        $region30: #{tpu_custom_call.1} parent=11 // pred_check_branch
          %352 = sbr.rel (%p350) target = $region32
        $region31: #{tpu_custom_call.1} parent=11 // pred_region
          %354 = vsyncadd [#allocation9], 0
          %s355 = sshll.u32 %s5, 4
          %s356 = int_to_ptr.hbm [resolvable:$true] %s355
          %s357 = sshll.u32 [#allocation10], 4
          %s358 = int_to_ptr.vmem [resolvable:$true] %s357
          %363 = dma.hbm_to_vmem [thread:$0]  %s356, 512, %s358, [#allocation9], 64, 64, 4
        $region32: #{tpu_custom_call.1} parent=11 // pred_fallthru
          _
        // Predicated region
        $region33: #{tpu_custom_call.1} parent=11 // pred_check
          %p364 = pneg %p180
        $region34: #{tpu_custom_call.1} parent=11 // pred_check_branch
          %366 = sbr.rel (%p364) target = $region36
        $region35: #{tpu_custom_call.1} parent=11 // pred_region
          _
        $region36: #{tpu_custom_call.1} parent=11 // pred_fallthru
          _
        // Predicated region
        $region37: #{tpu_custom_call.1} parent=11 // pred_check
          %p367 = pneg %p201
        $region38: #{tpu_custom_call.1} parent=11 // pred_check_branch
          %369 = sbr.rel (%p367) target = $region40
        $region39: #{tpu_custom_call.1} parent=11 // pred_region
          %371 = vsyncadd [#allocation12], 0
          %s372 = sshll.u32 %s7, 4
          %s373 = int_to_ptr.hbm [resolvable:$true] %s372
          %s374 = sshll.u32 [#allocation11], 4
          %s375 = int_to_ptr.vmem [resolvable:$true] %s374
          %380 = dma.hbm_to_vmem [thread:$0]  %s373, 256, %s375, [#allocation12], 64, 64, 4
        $region40: #{tpu_custom_call.1} parent=11 // pred_fallthru
          _
        // Predicated region
        $region41: #{tpu_custom_call.1} parent=11 // pred_check
          %p381 = pneg %p222
        $region42: #{tpu_custom_call.1} parent=11 // pred_check_branch
          %383 = sbr.rel (%p381) target = $region44
        $region43: #{tpu_custom_call.1} parent=11 // pred_region
          _
        $region44: #{tpu_custom_call.1} parent=11 // pred_fallthru
          _
      $region12: #{tpu_custom_call.1} parent=5 // pred_fallthru
        _
      %p384 = scmp.lt.s32.totalorder %s28, 16
      // Predicated region
      $region45: #{tpu_custom_call.1} parent=5 // pred_check
        %p385 = pneg %p384
      $region46: #{tpu_custom_call.1} parent=5 // pred_check_branch
        %387 = sbr.rel (%p385) target = $region48
      $region47: #{tpu_custom_call.1} parent=5 // pred_region
        // Predicated region
        $region49: #{tpu_custom_call.1} parent=47 // pred_check
          %p388 = pneg %p48
        $region50: #{tpu_custom_call.1} parent=47 // pred_check_branch
          %390 = sbr.rel (%p388) target = $region52
        $region51: #{tpu_custom_call.1} parent=47 // pred_region
          %s391 = sand.u32 %s38, 1
          %s392 = scalar_lea.sflag [#allocation3], %s391
          %s393 = sand.u32 %s38, 1
          %s394 = smul.addr %s393, 4
          %s395 = scalar_lea.vmem [#allocation2], %s394
          %397 = vsyncadd %s392, 0
          %s398 = smul.addr %s28, 4
          %s399 = scalar_lea.hbm %s0, %s398
          %s401 = sshll.u32 %s399, 4
          %s402 = int_to_ptr.hbm [resolvable:$true] %s401
          %s403 = sshll.u32 %s395, 4
          %s404 = int_to_ptr.vmem [resolvable:$true] %s403
          %406 = dma.hbm_to_vmem [thread:$0]  %s402, 64, %s404, %s392
        $region52: #{tpu_custom_call.1} parent=47 // pred_fallthru
          _
      $region48: #{tpu_custom_call.1} parent=5 // pred_fallthru
        _
      %p407 = scmp.le.s32.totalorder 1, %s28
      %p408 = scmp.lt.s32.totalorder %s28, 17
      %p409 = pnand %p407, %p408
      %p410 = pneg %p409
      // Predicated region
      $region53: #{tpu_custom_call.1} parent=5 // pred_check
        _
      $region54: #{tpu_custom_call.1} parent=5 // pred_check_branch
        %412 = sbr.rel (%p409) target = $region56
      $region55: #{tpu_custom_call.1} parent=5 // pred_region
        %s413 = ssub.s32 %s28, 1
        %s414 = sand.u32 %s41, 1
        %s415 = scalar_lea.sflag [#allocation3], %s414
        %s416 = sand.u32 %s41, 1
        %s417 = smul.addr %s416, 4
        %s418 = scalar_lea.vmem [#allocation2], %s417
        // Predicated region
        $region57: #{tpu_custom_call.1} parent=55 // pred_check
          %p419 = pneg %p54
        $region58: #{tpu_custom_call.1} parent=55 // pred_check_branch
          %421 = sbr.rel (%p419) target = $region60
        $region59: #{tpu_custom_call.1} parent=55 // pred_region
          %423 = dma.done %s415, 64
        $region60: #{tpu_custom_call.1} parent=55 // pred_fallthru
          _
        // Predicated region
        $region61: #{tpu_custom_call.1} parent=55 // pred_check
          %p424 = pneg %p75
        $region62: #{tpu_custom_call.1} parent=55 // pred_check_branch
          %426 = sbr.rel (%p424) target = $region64
        $region63: #{tpu_custom_call.1} parent=55 // pred_region
          %428 = dma.done [#allocation6], 256
        $region64: #{tpu_custom_call.1} parent=55 // pred_fallthru
          _
        // Predicated region
        $region65: #{tpu_custom_call.1} parent=55 // pred_check
          %p429 = pneg %p96
        $region66: #{tpu_custom_call.1} parent=55 // pred_check_branch
          %431 = sbr.rel (%p429) target = $region68
        $region67: #{tpu_custom_call.1} parent=55 // pred_region
          %433 = dma.done [#allocation6], 256
        $region68: #{tpu_custom_call.1} parent=55 // pred_fallthru
          _
        // Predicated region
        $region69: #{tpu_custom_call.1} parent=55 // pred_check
          %p434 = pneg %p117
        $region70: #{tpu_custom_call.1} parent=55 // pred_check_branch
          %436 = sbr.rel (%p434) target = $region72
        $region71: #{tpu_custom_call.1} parent=55 // pred_region
          %438 = dma.done [#allocation9], 512
        $region72: #{tpu_custom_call.1} parent=55 // pred_fallthru
          _
        // Predicated region
        $region73: #{tpu_custom_call.1} parent=55 // pred_check
          %p439 = pneg %p159
        $region74: #{tpu_custom_call.1} parent=55 // pred_check_branch
          %441 = sbr.rel (%p439) target = $region76
        $region75: #{tpu_custom_call.1} parent=55 // pred_region
          %443 = dma.done [#allocation9], 512
        $region76: #{tpu_custom_call.1} parent=55 // pred_fallthru
          _
        // Predicated region
        $region77: #{tpu_custom_call.1} parent=55 // pred_check
          %p444 = pneg %p201
        $region78: #{tpu_custom_call.1} parent=55 // pred_check_branch
          %446 = sbr.rel (%p444) target = $region80
        $region79: #{tpu_custom_call.1} parent=55 // pred_region
          %448 = dma.done [#allocation12], 256
        $region80: #{tpu_custom_call.1} parent=55 // pred_fallthru
          _
        %s449 = sand.u32 %s41, 1
        %s450 = scalar_lea.sflag [#allocation3], %s449
        %s451 = sand.u32 %s41, 1
        %s452 = smul.addr %s451, 4
        %s453 = scalar_lea.vmem [#allocation2], %s452
        %p454 = pneg %p54
        %p455 = pneg %p51
        %p456 = pneg %p75
        %p457 = pneg %p72
        %p458 = pneg %p96
        %p459 = pneg %p93
        %p460 = pneg %p117
        %p461 = pneg %p114
        %p462 = pneg %p138
        %p463 = pneg %p135
        %p464 = pneg %p159
        %p465 = pneg %p156
        %p466 = pneg %p180
        %p467 = pneg %p177
        %p468 = pneg %p201
        %p469 = pneg %p198
        %p470 = pneg %p222
        %p471 = pneg %p219
        %p472 = pneg %p248
        %p473 = pneg %p245
        %s474 = sand.u32 %s235, 1
        %s475 = scalar_lea.sflag [#allocation4], %s474
        %s476 = sand.u32 %s235, 1
        %s477 = smul.addr %s476, 8
        %s478 = scalar_lea.vmem [#allocation13], %s477
        %p479 = pneg %p269
        %p480 = pneg %p266
        %p481 = pneg %p290
        %p482 = pneg %p287
        %p484 = scmp.eq.s32.totalorder %s33, 0
        // Predicated region
        $region81: #{tpu_custom_call.1} parent=55 // pred_check
          %p485 = pneg %p484
        $region82: #{tpu_custom_call.1} parent=55 // pred_check_branch
          %487 = sbr.rel (%p485) target = $region84
        $region83: #{tpu_custom_call.1} parent=55 // pred_region
          %v488 = vld [vmem:[#allocation5] sm:$0xff]
          %v489 = vld [vmem:[#allocation5 + $0x8] sm:$0xff]
          %vm490 = vcmask 261120
          %491 = vst.msk [vmem:[#allocation14] sm:$0xff] %vm490, %v488
          %492 = vst.msk [vmem:[#allocation14 + $0x8] sm:$0xff] %vm490, %v489
          %v493 = vld [vmem:[#allocation7] sm:$0xff]
          %v494 = vld [vmem:[#allocation7 + $0x8] sm:$0xff]
          %495 = vst.msk [vmem:[#allocation16] sm:$0xff] %vm490, %v493
          %496 = vst.msk [vmem:[#allocation16 + $0x8] sm:$0xff] %vm490, %v494
        $region84: #{tpu_custom_call.1} parent=55 // pred_fallthru
          _
        %v497 = vld [vmem:[%s418] sm:$0xf]
        %v498 = vld [vmem:[#allocation14] sm:$0xff]
        %v499 = vld [vmem:[#allocation16] sm:$0xff]
        %v500 = vunpack.c.l.bf16 %v497
        %502 = vrot.lane.b32.xlu0 %v498, 32
        %v503 = vpop.permute.xlu0 %502
        %vm505 = vcmask 261120
        %v506 = vsel %vm505, %v500, %v503
        %v507 = vpack.c.bf16 %v506, %v506
        %v508 = vld [vmem:[#allocation8] sm:$0xf]
        %v509 = vld [vmem:[#allocation8 + $0x4] sm:$0xf]
        %v510 = vld [vmem:[#allocation8 + $0x8] sm:$0xf]
        %v511 = vld [vmem:[#allocation8 + $0xc] sm:$0xf]
        %v512 = vld [vmem:[#allocation8 + $0x10] sm:$0xf]
        %v513 = vld [vmem:[#allocation8 + $0x14] sm:$0xf]
        %v514 = vld [vmem:[#allocation8 + $0x18] sm:$0xf]
        %v515 = vld [vmem:[#allocation8 + $0x1c] sm:$0xf]
        %v516 = vld [vmem:[%s4] sm:$0x1]
        %v518 = vperm.slane %v516, 0
        %v528 = vunpack.c.l.b16 %v508
        %v529 = vunpack.c.l.b16 %v509
        %v530 = vunpack.c.l.b16 %v510
        %v531 = vunpack.c.l.b16 %v511
        %v532 = vunpack.c.l.b16 %v512
        %v533 = vunpack.c.l.b16 %v513
        %v534 = vunpack.c.l.b16 %v514
        %v535 = vunpack.c.l.b16 %v515
        %v536 = vpack.c.b16 %v529, %v528
        %v537 = vpack.c.b16 %v531, %v530
        %v538 = vpack.c.b16 %v533, %v532
        %v539 = vpack.c.b16 %v535, %v534
        %vm544 = vcmask 523264
        %v546 = vsel %vm544, %v507, 0
        %548 = vmatpush.bf16.msra.mxu0 0
        %549 = vmatpush.bf16.msra.mxu0 0
        %550 = vmatpush.bf16.msra.mxu0 0
        %551 = vmatpush.bf16.msra.mxu0 0
        %552 = vmatpush.bf16.msra.mxu0 %v539
        %553 = vmatpush.bf16.msra.mxu0 %v538
        %554 = vmatpush.bf16.msra.mxu0 %v537
        %555 = vmatpush.bf16.msra.mxu0 %v536
        %556 = vmatmul.bf16.gmra.mxu0 %v546
        %v557 = vpop.f32.mrf.mxu0
        %v558 = vadd.f32 %v518, %v557
        %v559 = vpop.f32.mrf.mxu0
        %560 = vdwg.mxu0
        %v561 = vlaneseq
        %v562 = vand.u32 %v561, 127
        %vm563 = vcmp.ge.s32.totalorder %v562, 64
        %vm564 = vcmp.lt.s32.totalorder %v562, 96
        %vm565 = vmand %vm563, %vm564
        %v566 = vmul.f32 %v558, 0.5
        %v567 = vsel %vm565, %v558, %v566
        %v568 = vtanh.pop %v567
        %v569 = vmul.f32 %v568, 0.5
        %v570 = vadd.f32 %v569, 0.5
        %v571 = vsel %vm565, %v568, %v570
        %573 = vrot.lane.b32.xlu0 %v499, 32
        %v574 = vpop.permute.xlu0 %573
        %v576 = vmul.f32 %v571, %v574
        %578 = vrot.lane.b32.xlu0 %v571, 64
        %v579 = vpop.permute.xlu0 %578
        %v581 = vmul.f32 %v571, %v579
        %583 = vrot.lane.b32.xlu0 %v581, 32
        %v584 = vpop.permute.xlu0 %583
        %v586 = vadd.f32 %v576, %v584
        %v587 = vtanh.pop %v586
        %589 = vrot.lane.b32.xlu0 %v587, 64
        %v590 = vpop.permute.xlu0 %589
        %v592 = vmul.f32 %v571, %v590
        %s593 = scalar_lea.vmem [#allocation14], 8
        %v594 = vld [vmem:[%s593] sm:$0xff]
        %s595 = scalar_lea.vmem [#allocation16], 8
        %v596 = vld [vmem:[%s595] sm:$0xff]
        %598 = vrot.lane.b32.xlu0 %v592, 32
        %v599 = vpop.permute.xlu0 %598
        %602 = vrot.lane.b32.xlu0 %v594, 32
        %v603 = vpop.permute.xlu0 %602
        %v605 = vsel %vm505, %v599, %v603
        %v606 = vpack.c.bf16 %v605, %v605
        %v607 = vld [vmem:[#allocation10] sm:$0xf]
        %v608 = vld [vmem:[#allocation10 + $0x4] sm:$0xf]
        %v609 = vld [vmem:[#allocation10 + $0x8] sm:$0xf]
        %v610 = vld [vmem:[#allocation10 + $0xc] sm:$0xf]
        %v611 = vld [vmem:[#allocation10 + $0x10] sm:$0xf]
        %v612 = vld [vmem:[#allocation10 + $0x14] sm:$0xf]
        %v613 = vld [vmem:[#allocation10 + $0x18] sm:$0xf]
        %v614 = vld [vmem:[#allocation10 + $0x1c] sm:$0xf]
        %v615 = vld [vmem:[%s6] sm:$0x1]
        %v617 = vperm.slane %v615, 0
        %v627 = vunpack.c.l.b16 %v607
        %v628 = vunpack.c.l.b16 %v608
        %v629 = vunpack.c.l.b16 %v609
        %v630 = vunpack.c.l.b16 %v610
        %v631 = vunpack.c.l.b16 %v611
        %v632 = vunpack.c.l.b16 %v612
        %v633 = vunpack.c.l.b16 %v613
        %v634 = vunpack.c.l.b16 %v614
        %v635 = vpack.c.b16 %v628, %v627
        %v636 = vpack.c.b16 %v630, %v629
        %v637 = vpack.c.b16 %v632, %v631
        %v638 = vpack.c.b16 %v634, %v633
        %v644 = vsel %vm544, %v606, 0
        %646 = vmatpush.bf16.msra.mxu0 0
        %647 = vmatpush.bf16.msra.mxu0 0
        %648 = vmatpush.bf16.msra.mxu0 0
        %649 = vmatpush.bf16.msra.mxu0 0
        %650 = vmatpush.bf16.msra.mxu0 %v638
        %651 = vmatpush.bf16.msra.mxu0 %v637
        %652 = vmatpush.bf16.msra.mxu0 %v636
        %653 = vmatpush.bf16.msra.mxu0 %v635
        %654 = vmatmul.bf16.gmra.mxu0 %v644
        %v655 = vpop.f32.mrf.mxu0
        %v656 = vadd.f32 %v617, %v655
        %v657 = vpop.f32.mrf.mxu0
        %658 = vdwg.mxu0
        %v659 = vmul.f32 %v656, 0.5
        %v660 = vsel %vm565, %v656, %v659
        %v661 = vtanh.pop %v660
        %v662 = vmul.f32 %v661, 0.5
        %v663 = vadd.f32 %v662, 0.5
        %v664 = vsel %vm565, %v661, %v663
        %666 = vrot.lane.b32.xlu0 %v596, 32
        %v667 = vpop.permute.xlu0 %666
        %v669 = vmul.f32 %v664, %v667
        %671 = vrot.lane.b32.xlu0 %v664, 64
        %v672 = vpop.permute.xlu0 %671
        %v674 = vmul.f32 %v664, %v672
        %676 = vrot.lane.b32.xlu0 %v674, 32
        %v677 = vpop.permute.xlu0 %676
        %v679 = vadd.f32 %v669, %v677
        %v680 = vtanh.pop %v679
        %682 = vrot.lane.b32.xlu0 %v680, 64
        %v683 = vpop.permute.xlu0 %682
        %v685 = vmul.f32 %v664, %v683
        %686 = vst.msk [vmem:[#allocation14] sm:$0xff] %vm505, %v599
        %688 = vrot.lane.b32.xlu0 %v685, 32
        %v689 = vpop.permute.xlu0 %688
        %691 = vst.msk [vmem:[%s593] sm:$0xff] %vm505, %v689
        %693 = vrot.lane.b32.xlu0 %v586, 96
        %v694 = vpop.permute.xlu0 %693
        %696 = vst.msk [vmem:[#allocation16] sm:$0xff] %vm505, %v694
        %698 = vrot.lane.b32.xlu0 %v679, 96
        %v699 = vpop.permute.xlu0 %698
        %701 = vst.msk [vmem:[%s595] sm:$0xff] %vm505, %v699
        %v702 = vpack.c.bf16 %v685, %v685
        %v703 = vld [vmem:[#allocation11] sm:$0xf]
        %v704 = vld [vmem:[#allocation11 + $0x4] sm:$0xf]
        %v705 = vld [vmem:[#allocation11 + $0x8] sm:$0xf]
        %v706 = vld [vmem:[#allocation11 + $0xc] sm:$0xf]
        %v707 = vld [vmem:[%s8] sm:$0x1]
        %v709 = vperm.slane %v707, 0
        %712 = vrot.lane.b32.xlu0 %v702, 32
        %v713 = vpop.permute.xlu0 %712
        %v718 = vunpack.c.l.b16 %v703
        %v719 = vunpack.c.l.b16 %v704
        %v720 = vunpack.c.l.b16 %v705
        %v721 = vunpack.c.l.b16 %v706
        %v722 = vpack.c.b16 %v719, %v718
        %v723 = vpack.c.b16 %v721, %v720
        %v727 = vsel %vm505, %v713, 0
        %729 = vmatpush.bf16.msra.mxu0 0
        %730 = vmatpush.bf16.msra.mxu0 0
        %731 = vmatpush.bf16.msra.mxu0 0
        %732 = vmatpush.bf16.msra.mxu0 0
        %733 = vmatpush.bf16.msra.mxu0 0
        %734 = vmatpush.bf16.msra.mxu0 0
        %735 = vmatpush.bf16.msra.mxu0 %v723
        %736 = vmatpush.bf16.msra.mxu0 %v722
        %737 = vmatmul.bf16.gmra.mxu0 %v727
        %v738 = vpop.f32.mrf.mxu0
        %v739 = vadd.f32 %v709, %v738
        %v740 = vpop.f32.mrf.mxu0
        %741 = vdwg.mxu0
        %742 = vst [vmem:[%s478] sm:$0xff] %v739
        %s743 = sand.u32 %s235, 1
        %s744 = scalar_lea.sflag [#allocation4], %s743
        %s745 = sand.u32 %s235, 1
        %s746 = smul.addr %s745, 8
        %s747 = scalar_lea.vmem [#allocation13], %s746
        // Predicated region
        $region85: #{tpu_custom_call.1} parent=55 // pred_check
          %p748 = pneg %p245
        $region86: #{tpu_custom_call.1} parent=55 // pred_check_branch
          %750 = sbr.rel (%p748) target = $region88
        $region87: #{tpu_custom_call.1} parent=55 // pred_region
          %752 = vsyncadd %s744, 0
          %s753 = smul.addr %s33, 8
          %s754 = scalar_lea.hbm %s9, %s753
          %s756 = sshll.u32 %s747, 4
          %s757 = int_to_ptr.vmem [resolvable:$true] %s756
          %s758 = sshll.u32 %s754, 4
          %s759 = int_to_ptr.hbm [resolvable:$true] %s758
          %761 = dma.vmem_to_hbm [thread:$0]  %s757, 128, %s759, %s744
        $region88: #{tpu_custom_call.1} parent=55 // pred_fallthru
          _
        // Predicated region
        $region89: #{tpu_custom_call.1} parent=55 // pred_check
          %p762 = pneg %p266
        $region90: #{tpu_custom_call.1} parent=55 // pred_check_branch
          %764 = sbr.rel (%p762) target = $region92
        $region91: #{tpu_custom_call.1} parent=55 // pred_region
          %766 = vsyncadd [#allocation15], 0
          %s767 = sshll.u32 [#allocation14], 4
          %s768 = int_to_ptr.vmem [resolvable:$true] %s767
          %s769 = sshll.u32 %s10, 4
          %s770 = int_to_ptr.hbm [resolvable:$true] %s769
          %775 = dma.vmem_to_hbm [thread:$0]  %s768, 256, %s770, [#allocation15], 128, 128, 8
        $region92: #{tpu_custom_call.1} parent=55 // pred_fallthru
          _
        // Predicated region
        $region93: #{tpu_custom_call.1} parent=55 // pred_check
          %p776 = pneg %p287
        $region94: #{tpu_custom_call.1} parent=55 // pred_check_branch
          %778 = sbr.rel (%p776) target = $region96
        $region95: #{tpu_custom_call.1} parent=55 // pred_region
          %780 = vsyncadd [#allocation15], 0
          %s781 = sshll.u32 [#allocation16], 4
          %s782 = int_to_ptr.vmem [resolvable:$true] %s781
          %s783 = sshll.u32 %s11, 4
          %s784 = int_to_ptr.hbm [resolvable:$true] %s783
          %789 = dma.vmem_to_hbm [thread:$0]  %s782, 256, %s784, [#allocation15], 128, 128, 8
        $region96: #{tpu_custom_call.1} parent=55 // pred_fallthru
          _
        // Predicated region
        $region97: #{tpu_custom_call.1} parent=55 // pred_check
          %p790 = pneg %p266
        $region98: #{tpu_custom_call.1} parent=55 // pred_check_branch
          %792 = sbr.rel (%p790) target = $region100
        $region99: #{tpu_custom_call.1} parent=55 // pred_region
          %794 = dma.done [#allocation15], 256
        $region100: #{tpu_custom_call.1} parent=55 // pred_fallthru
          _
        // Predicated region
        $region101: #{tpu_custom_call.1} parent=55 // pred_check
          %p795 = pneg %p287
        $region102: #{tpu_custom_call.1} parent=55 // pred_check_branch
          %797 = sbr.rel (%p795) target = $region104
        $region103: #{tpu_custom_call.1} parent=55 // pred_region
          %799 = dma.done [#allocation15], 256
        $region104: #{tpu_custom_call.1} parent=55 // pred_fallthru
          _
      $region56: #{tpu_custom_call.1} parent=5 // pred_fallthru
        _
      %p800 = scmp.le.s32.totalorder 2, %s28
      // Predicated region
      $region105: #{tpu_custom_call.1} parent=5 // pred_check
        %p801 = pneg %p800
      $region106: #{tpu_custom_call.1} parent=5 // pred_check_branch
        %803 = sbr.rel (%p801) target = $region108
      $region107: #{tpu_custom_call.1} parent=5 // pred_region
        %s804 = ssub.s32 %s28, 2
        // Predicated region
        $region109: #{tpu_custom_call.1} parent=107 // pred_check
          %p805 = pneg %p251
        $region110: #{tpu_custom_call.1} parent=107 // pred_check_branch
          %807 = sbr.rel (%p805) target = $region112
        $region111: #{tpu_custom_call.1} parent=107 // pred_region
          %s808 = sand.u32 %s236, 1
          %s809 = scalar_lea.sflag [#allocation4], %s808
          %s810 = sand.u32 %s236, 1
          %s811 = smul.addr %s810, 8
          %s812 = scalar_lea.vmem [#allocation13], %s811
          %814 = dma.done %s809, 128
        $region112: #{tpu_custom_call.1} parent=107 // pred_fallthru
          _
      $region108: #{tpu_custom_call.1} parent=5 // pred_fallthru
        _
    $region6: #{tpu_custom_call.1} parent=1 // loop_footer
      %s32 = sadd.s32 1, %s28
    $region7: #{tpu_custom_call.1} parent=1 // loop_footer_branch
      %27 = sbr.rel target = $region3
    $region8: #{tpu_custom_call.1} parent=1 // loop_exit
      _
    %815 = vsyncpa [#allocation3], 1
    %s816 = scalar_lea.sflag [#allocation3], 1
    %817 = vsyncpa %s816, 1
    %818 = vsyncpa [#allocation6], 1
    %819 = vsyncpa [#allocation9], 1
    %820 = vsyncpa [#allocation12], 1
    %821 = vsyncpa [#allocation4], 1
    %s822 = scalar_lea.sflag [#allocation4], 1
    %823 = vsyncpa %s822, 1
    %824 = vsyncpa [#allocation15], 1

</llo_original>
